<compile_context>
chip_gen: v6e
topology: v6e:2x2x1
jax: 0.10.0
libtpu: 0.0.40
codegen_flags: <defaults>
</compile_context>

<pallas_src>
import functools

import jax
import jax.numpy as jnp
from jax import lax
from jax.experimental import pallas as pl
from jax.experimental.pallas import tpu as pltpu


def _round_up(x: int, m: int) -> int:
    return (x + m - 1) // m * m


def _pick_tiling(T: int, R: int, itemsize: int, lane_block):
    """Generation-aware lane-block size and VMEM limit."""
    LANE = 128
    try:
        vmem_cap = pltpu.get_tpu_info().vmem_capacity_bytes
    except Exception:
        vmem_cap = 128 << 20  # assume v5e/v6e-class if the query is unavailable
    if vmem_cap <= (80 << 20):
        # v7x-class: 64 MiB VMEM per TC, ~3.2 TB/s HBM -> bigger tiles, tighter VMEM cap.
        target_in_bytes = 7 << 19          # ~3.5 MiB input tile
        vmem_limit = 48 << 20
    else:
        # v5e / v6e: 128 MiB VMEM, slower HBM -> ~2 MiB tiles are enough for the roofline.
        target_in_bytes = 2 << 20
        vmem_limit = 64 << 20
    if lane_block is None:
        bc = max(LANE, (target_in_bytes // (itemsize * T)) // LANE * LANE)
        bc = min(bc, _round_up(R, LANE))
        # NOTE: for very large T (T*128*itemsize exceeding the tile budget) this bottoms out
        # at 128 lanes; the right fix then is T-axis tiling with a (K-1)*dilation halo
        # (overlapping index_map blocks).  Not needed at these shapes.
        lane_block = bc
    return lane_block, vmem_limit


def _convt_kernel(w_ref, x_ref, o_ref, *, K: int, dilation: int, halo: int, T: int):
    """Depthwise 1-D conv along the SUBLANE (time) axis.

    w_ref: (K, BC)  per-lane taps (already broadcast to each row's channel)
    x_ref: (T, BC)  input tile  (time on sublanes, rows on lanes)
    o_ref: (T, BC)  output tile
    """
    x = x_ref[...].astype(jnp.float32)          # loaded once; taps come from vreg shifts
    w = w_ref[...].astype(jnp.float32)          # (K, BC)
    t_idx = lax.broadcasted_iota(jnp.int32, x.shape, 0)   # hoisted out of the tap loop

    acc = jnp.zeros(x.shape, jnp.float32)
    for k in range(K):                          # K is small & static -> unrolled
        off = k * dilation - halo               # input row for output row t is t + off
        if off == 0:
            tap = x
        else:
            # Shift along sublanes on already-loaded vregs (XLU slot) instead of
            # misaligned re-loads; zero the rows that fall into the halo.
            shifted = pltpu.roll(x, shift=(-off) % T, axis=0)
            valid = jnp.logical_and(t_idx + off >= 0, t_idx + off < T)
            tap = jnp.where(valid, shifted, 0.0)
        acc = acc + w[k] * tap                  # vector*vector FMA per tap
    o_ref[...] = acc.astype(o_ref.dtype)


def conv_t(x: jax.Array, weight: jax.Array, *, num_groups: int, dilation: int = 1,
           lane_block: int | None = None) -> jax.Array:
    """Forward pass of ConvT.

    Args:
      x:       (N, C, F, T) float array (NCHW), F divisible by num_groups.
      weight:  (C*num_groups, 1, 1, K) depthwise Conv2d weight (PyTorch layout).
    Returns:
      (N, C, F, T) array.
    """
    N, C, F, T = x.shape
    G = num_groups
    assert F % G == 0, "F must be divisible by num_groups"
    Cp, Fp = C * G, F // G
    K = weight.shape[-1]
    assert ((K - 1) * dilation) % 2 == 0, "ConvT requires (K-1)*dilation even (same-length output)"
    halo = (K - 1) * dilation // 2

    R = N * Cp * Fp
    itemsize = jnp.dtype(x.dtype).itemsize
    BC, vmem_limit = _pick_tiling(T, R, itemsize, lane_block)
    Rp = _round_up(R, BC)

    # ---- layout plumbing (plain JAX): channel-major, lane-dense slab (T, R) ----
    # NOTE: this transpose + the inverse below are the dominant remaining HBM traffic;
    # persist this layout in the surrounding model to remove them.
    xt = x.reshape(R, T).T                                        # (T, R)
    if Rp != R:
        xt = jnp.pad(xt, ((0, 0), (0, Rp - R)))

    # Per-lane weight slab (K, Rp): row r = (n*Cp + cp)*Fp + fp uses channel cp's taps.
    # Weight traffic is only ~K/T of the input.
    wt = weight.reshape(Cp, K).astype(jnp.float32).T              # (K, Cp)
    wlane = jnp.broadcast_to(wt[:, None, :, None], (K, N, Cp, Fp)).reshape(K, R)
    if Rp != R:
        wlane = jnp.pad(wlane, ((0, 0), (0, Rp - R)))

    grid = (Rp // BC,)
    out = pl.pallas_call(
        functools.partial(_convt_kernel, K=K, dilation=dilation, halo=halo, T=T),
        out_shape=jax.ShapeDtypeStruct((T, Rp), x.dtype),
        grid=grid,
        in_specs=[
            pl.BlockSpec((K, BC), lambda j: (0, j)),   # per-lane taps
            pl.BlockSpec((T, BC), lambda j: (0, j)),   # full T on sublanes, BC rows on lanes
        ],
        out_specs=pl.BlockSpec((T, BC), lambda j: (0, j)),
        compiler_params=pltpu.CompilerParams(
            dimension_semantics=("parallel",),
            vmem_limit_bytes=vmem_limit,
        ),
    )(wlane, xt)

    # ---- back to NCHW ----
    out = out[:, :R].T.reshape(N, Cp, Fp, T)
    return out.reshape(N, C, F, T)


def _reference(x, weight, num_groups, dilation):
    """Pure-JAX reference of the same semantics for a correctness check."""
    N, C, F, T = x.shape
    G = num_groups
    Cp, Fp = C * G, F // G
    K = weight.shape[-1]
    pad = (K - 1) * dilation // 2
    xr = x.reshape(N, Cp, Fp, T)
    xpad = jnp.pad(xr, ((0, 0), (0, 0), (0, 0), (pad, pad)))
    T_out = T + 2 * pad - dilation * (K - 1)
    w = weight.reshape(Cp, K)
    out = jnp.zeros((N, Cp, Fp, T_out), jnp.float32)
    for k in range(K):
        off = k * dilation
        out = out + w[None, :, None, k:k + 1] * xpad[..., off:off + T_out]
    return out.astype(x.dtype).reshape(N, C, F, T_out)


if __name__ == "__main__":
    key = jax.random.PRNGKey(0)
    kx, kw, kx2, kw2 = jax.random.split(key, 4)

    # Case 1: ConvT(in_channels=4, num_groups=2, kernel_size=3, dilation=1), x=(2,4,16,16).
    in_channels, num_groups, kernel_size, dilation = 4, 2, 3, 1
    x = jax.random.normal(kx, (2, in_channels, 16, 16), dtype=jnp.float32)
    out_channels = in_channels * num_groups
    weight = jax.random.normal(kw, (out_channels, 1, 1, kernel_size), dtype=jnp.float32) * 0.1

    fn = jax.jit(functools.partial(conv_t, num_groups=num_groups, dilation=dilation))
    y = jax.block_until_ready(fn(x, weight))
    y_ref = _reference(x, weight, num_groups, dilation)
    assert y.shape == x.shape, (y.shape, x.shape)
    assert jnp.allclose(y, y_ref, atol=1e-5, rtol=1e-5), "case 1 mismatch vs reference"

    # Case 2: larger kernel + forced small lane blocks -> exercises a multi-block grid,
    # lane padding of the last block, and the boundary (roll + mask) taps.
    C2, G2, K2, d2 = 6, 3, 5, 1
    x2 = jax.random.normal(kx2, (2, C2, 18, 24), dtype=jnp.float32)
    w2 = jax.random.normal(kw2, (C2 * G2, 1, 1, K2), dtype=jnp.float32) * 0.1
    fn2 = jax.jit(functools.partial(conv_t, num_groups=G2, dilation=d2, lane_block=128))
    y2 = jax.block_until_ready(fn2(x2, w2))
    y2_ref = _reference(x2, w2, G2, d2)
    assert y2.shape == x2.shape, (y2.shape, x2.shape)
    assert jnp.allclose(y2, y2_ref, atol=1e-5, rtol=1e-5), "case 2 mismatch vs reference"

    print("KERNEL_OK")
</pallas_src>

<mosaic_0001>
module attributes {stable_mosaic.version = 11 : i64} {
  func.func @_convt_kernel(%arg0: i32, %arg1: memref<3x128xf32, #tpu.memory_space<vmem>>, %arg2: memref<16x128xf32, #tpu.memory_space<vmem>>, %arg3: memref<16x128xf32, #tpu.memory_space<vmem>>) attributes {dimension_semantics = [#tpu.dimension_semantics<parallel>], iteration_bounds = array<i64: 1>, scalar_prefetch = 0 : i64, scratch_operands = 0 : i64, tpu.core_type = #tpu.core_type<tc>, window_params = [{transform_indices = @transform_0, window_bounds = array<i64: 3, 128>}, {transform_indices = @transform_1, window_bounds = array<i64: 16, 128>}, {transform_indices = @transform_2, window_bounds = array<i64: 16, 128>}]} {
    %c0 = arith.constant 0 : index
    %c0_0 = arith.constant 0 : index
    %0 = vector.load %arg2[%c0, %c0_0] : memref<16x128xf32, #tpu.memory_space<vmem>>, vector<16x128xf32>
    %c0_1 = arith.constant 0 : index
    %c0_2 = arith.constant 0 : index
    %1 = vector.load %arg1[%c0_1, %c0_2] : memref<3x128xf32, #tpu.memory_space<vmem>>, vector<3x128xf32>
    %2 = tpu.iota {dimensions = array<i32: 0>} : vector<16x128xi32>
    %cst = arith.constant 0.000000e+00 : f32
    %3 = vector.broadcast %cst : f32 to vector<16x128xf32>
    %c1_i32 = arith.constant 1 : i32
    %4 = tpu.dynamic_rotate %0 by %c1_i32 dim 0 : vector<16x128xf32>, i32 -> vector<16x128xf32>
    %c-1_i32 = arith.constant -1 : i32
    %5 = vector.broadcast %c-1_i32 : i32 to vector<16x128xi32>
    %6 = arith.addi %2, %5 : vector<16x128xi32>
    %c0_i32 = arith.constant 0 : i32
    %7 = vector.broadcast %c0_i32 : i32 to vector<16x128xi32>
    %8 = arith.cmpi sge, %6, %7 : vector<16x128xi32>
    %c-1_i32_3 = arith.constant -1 : i32
    %9 = vector.broadcast %c-1_i32_3 : i32 to vector<16x128xi32>
    %10 = arith.addi %2, %9 : vector<16x128xi32>
    %c16_i32 = arith.constant 16 : i32
    %11 = vector.broadcast %c16_i32 : i32 to vector<16x128xi32>
    %12 = arith.cmpi slt, %10, %11 : vector<16x128xi32>
    %13 = arith.andi %8, %12 : vector<16x128xi1>
    %cst_4 = arith.constant 0.000000e+00 : f32
    %14 = vector.broadcast %cst_4 : f32 to vector<16x128xf32>
    %15 = arith.select %13, %4, %14 : vector<16x128xi1>, vector<16x128xf32>
    %16 = vector.extract_strided_slice %1 {offsets = [0, 0], sizes = [1, 128], strides = [1, 1]} : vector<3x128xf32> to vector<1x128xf32>
    %17 = vector.shape_cast %16 : vector<1x128xf32> to vector<128xf32>
    %18 = vector.shape_cast %17 : vector<128xf32> to vector<1x128xf32>
    %19 = vector.broadcast %18 : vector<1x128xf32> to vector<16x128xf32>
    %20 = arith.mulf %19, %15 : vector<16x128xf32>
    %21 = arith.addf %3, %20 : vector<16x128xf32>
    %22 = vector.extract_strided_slice %1 {offsets = [1, 0], sizes = [1, 128], strides = [1, 1]} : vector<3x128xf32> to vector<1x128xf32>
    %23 = vector.shape_cast %22 : vector<1x128xf32> to vector<128xf32>
    %24 = vector.shape_cast %23 : vector<128xf32> to vector<1x128xf32>
    %25 = vector.broadcast %24 : vector<1x128xf32> to vector<16x128xf32>
    %26 = arith.mulf %25, %0 : vector<16x128xf32>
    %27 = arith.addf %21, %26 : vector<16x128xf32>
    %c15_i32 = arith.constant 15 : i32
    %28 = tpu.dynamic_rotate %0 by %c15_i32 dim 0 : vector<16x128xf32>, i32 -> vector<16x128xf32>
    %c1_i32_5 = arith.constant 1 : i32
    %29 = vector.broadcast %c1_i32_5 : i32 to vector<16x128xi32>
    %30 = arith.addi %2, %29 : vector<16x128xi32>
    %c0_i32_6 = arith.constant 0 : i32
    %31 = vector.broadcast %c0_i32_6 : i32 to vector<16x128xi32>
    %32 = arith.cmpi sge, %30, %31 : vector<16x128xi32>
    %c1_i32_7 = arith.constant 1 : i32
    %33 = vector.broadcast %c1_i32_7 : i32 to vector<16x128xi32>
    %34 = arith.addi %2, %33 : vector<16x128xi32>
    %c16_i32_8 = arith.constant 16 : i32
    %35 = vector.broadcast %c16_i32_8 : i32 to vector<16x128xi32>
    %36 = arith.cmpi slt, %34, %35 : vector<16x128xi32>
    %37 = arith.andi %32, %36 : vector<16x128xi1>
    %cst_9 = arith.constant 0.000000e+00 : f32
    %38 = vector.broadcast %cst_9 : f32 to vector<16x128xf32>
    %39 = arith.select %37, %28, %38 : vector<16x128xi1>, vector<16x128xf32>
    %40 = vector.extract_strided_slice %1 {offsets = [2, 0], sizes = [1, 128], strides = [1, 1]} : vector<3x128xf32> to vector<1x128xf32>
    %41 = vector.shape_cast %40 : vector<1x128xf32> to vector<128xf32>
    %42 = vector.shape_cast %41 : vector<128xf32> to vector<1x128xf32>
    %43 = vector.broadcast %42 : vector<1x128xf32> to vector<16x128xf32>
    %44 = arith.mulf %43, %39 : vector<16x128xf32>
    %45 = arith.addf %27, %44 : vector<16x128xf32>
    %c0_10 = arith.constant 0 : index
    %c0_11 = arith.constant 0 : index
    %46 = vector.load %arg3[%c0_10, %c0_11] : memref<16x128xf32, #tpu.memory_space<vmem>>, vector<16x128xf32>
    tpu.vector_store %arg3[%c0_10, %c0_11], %45 {strides = array<i32>} : memref<16x128xf32, #tpu.memory_space<vmem>>, vector<16x128xf32>,
    return
  }
  func.func @transform_0(%arg0: i32) -> (i32, i32) {
    %c0_i32 = arith.constant 0 : i32
    %c0_i32_0 = arith.constant 0 : i32
    return %c0_i32, %arg0 : i32, i32
  }
  func.func @transform_1(%arg0: i32) -> (i32, i32) {
    %c0_i32 = arith.constant 0 : i32
    %c0_i32_0 = arith.constant 0 : i32
    return %c0_i32, %arg0 : i32, i32
  }
  func.func @transform_2(%arg0: i32) -> (i32, i32) {
    %c0_i32 = arith.constant 0 : i32
    %c0_i32_0 = arith.constant 0 : i32
    return %c0_i32, %arg0 : i32, i32
  }
}

</mosaic_0001>

<llo_original>
// kernel: conv_t.1
$region0: #{conv_t.1}
  #allocation0 [shape = 'u32[]', space=smem, size = 0x4, offset = 0x4, fixed_abs, tag = 'smem constant byte address 0x4 - core index']
  #allocation1 [shape = 'u32[144,128]{1,0:T(1,128)}', space=vmem, size = 0x12000, scoped, tag = 'internal scratch']
  %s0 = inlined_call_operand.vmem [shape: f32[3,128], index: 0, kind: input, shape index: {}]
  %s1 = inlined_call_operand.vmem [shape: f32[16,128], index: 1, kind: input, shape index: {}]
  %s2 = inlined_call_operand.vmem [shape: f32[16,128], index: 2, kind: output, shape index: {}]
  %s3 = sld [smem:[#allocation0]]
  $region18: #{conv_t.1} parent=0
    _
  %s5 = ssub.s32 1, %s3
  %s6 = scalar_select 0, %s5, %s3
  // Predicated region
  $region2: #{conv_t.1} parent=0 // pred_check
    _
  $region3: #{conv_t.1} parent=0 // pred_check_branch
    %8 = sbr.rel (0) target = $region5
  $region4: #{conv_t.1} parent=0 // pred_region
    _
  $region5: #{conv_t.1} parent=0 // pred_fallthru
    _
  // Predicated region
  $region6: #{conv_t.1} parent=0 // pred_check
    _
  $region7: #{conv_t.1} parent=0 // pred_check_branch
    %10 = sbr.rel (0) target = $region9
  $region8: #{conv_t.1} parent=0 // pred_region
    _
  $region9: #{conv_t.1} parent=0 // pred_fallthru
    _
  %v11 = vld [vmem:[%s1] sm:$0xff]
  %v12 = vld [vmem:[%s1 + $0x8] sm:$0xff]
  %v13 = vld [vmem:[%s0] sm:$0x7]
  %v14 = vlaneseq
  %v15 = vshrl.u32 %v14, 7
  %v16 = vadd.s32 %v15, 8
  %v17 = vrot.slane %v11, 7
  %v18 = vrot.slane %v12, 7
  %vm19 = vcmp.lt.s32.totalorder %v15, 1
  %v20 = vsel %vm19, %v17, %v18
  %v21 = vsel %vm19, %v18, %v17
  %v22 = vadd.s32 %v15, 4294967295
  %v23 = vadd.s32 %v16, 4294967295
  %vm24 = vcmp.ge.s32.totalorder %v22, 0
  %vm25 = vcmp.ge.s32.totalorder %v23, 0
  %vm26 = vcmp.lt.s32.totalorder %v22, 16
  %vm27 = vcmp.lt.s32.totalorder %v23, 16
  %vm28 = vmand %vm24, %vm26
  %vm29 = vmand %vm25, %vm27
  %v30 = vsel %vm28, %v21, 0.0
  %v31 = vsel %vm29, %v20, 0.0
  %v32 = vlaneseq
  %v33 = vshrl.u32 %v32, 7
  %v34 = vsub.s32 0, %v33
  %v35 = vrot.slane %v13, %v34
  %v36 = vmul.f32 %v35, %v30
  %v37 = vmul.f32 %v35, %v31
  %v38 = vadd.f32 %v36, 0.0
  %v39 = vadd.f32 %v37, 0.0
  %v40 = vlaneseq
  %v41 = vshrl.u32 %v40, 7
  %v42 = vsub.s32 1, %v41
  %v43 = vrot.slane %v13, %v42
  %v44 = vmul.f32 %v43, %v11
  %v45 = vmul.f32 %v43, %v12
  %v46 = vadd.f32 %v38, %v44
  %v47 = vadd.f32 %v39, %v45
  %v48 = vrot.slane %v11, 1
  %v49 = vrot.slane %v12, 1
  %vm50 = vcmp.lt.s32.totalorder %v15, 7
  %v51 = vsel %vm50, %v48, %v49
  %v52 = vsel %vm50, %v49, %v48
  %v53 = vadd.s32 %v15, 1
  %v54 = vadd.s32 %v16, 1
  %vm55 = vcmp.ge.s32.totalorder %v53, 0
  %vm56 = vcmp.ge.s32.totalorder %v54, 0
  %vm57 = vcmp.lt.s32.totalorder %v53, 16
  %vm58 = vcmp.lt.s32.totalorder %v54, 16
  %vm59 = vmand %vm55, %vm57
  %vm60 = vmand %vm56, %vm58
  %v61 = vsel %vm59, %v51, 0.0
  %v62 = vsel %vm60, %v52, 0.0
  %v63 = vlaneseq
  %v64 = vshrl.u32 %v63, 7
  %v65 = vsub.s32 2, %v64
  %v66 = vrot.slane %v13, %v65
  %v67 = vmul.f32 %v66, %v61
  %v68 = vmul.f32 %v66, %v62
  %v69 = vadd.f32 %v46, %v67
  %v70 = vadd.f32 %v47, %v68
  %71 = vst [vmem:[%s2] sm:$0xff] %v69
  %72 = vst [vmem:[%s2 + $0x8] sm:$0xff] %v70
  // Predicated region
  $region10: #{conv_t.1} parent=0 // pred_check
    _
  $region11: #{conv_t.1} parent=0 // pred_check_branch
    %74 = sbr.rel (0) target = $region13
  $region12: #{conv_t.1} parent=0 // pred_region
    _
  $region13: #{conv_t.1} parent=0 // pred_fallthru
    _
  // Predicated region
  $region14: #{conv_t.1} parent=0 // pred_check
    _
  $region15: #{conv_t.1} parent=0 // pred_check_branch
    %76 = sbr.rel (0) target = $region17
  $region16: #{conv_t.1} parent=0 // pred_region
    _
  $region17: #{conv_t.1} parent=0 // pred_fallthru
    _

</llo_original>
